<compile_context>
chip_gen: v7x
topology: tpu7x:2x2x1
jax: 0.10.0
libtpu: 0.0.40
codegen_flags: <defaults>
</compile_context>

<pallas_src>
import functools

import jax
import jax.numpy as jnp
from jax.experimental import pallas as pl
from jax.experimental.pallas import tpu as pltpu

# Older jax releases expose CompilerParams as TPUCompilerParams.
_CompilerParams = getattr(pltpu, "CompilerParams", None) or getattr(
    pltpu, "TPUCompilerParams")

_TM_MAX = 1024                    # dst-tile rows (multiple of 32: int8 packing)
_TK_MAX = 4096                    # src-tile cols (reduction axis)
_H_RESIDENT_BYTES = 8 * 1024 * 1024   # keep H fully VMEM-resident below this
_VMEM_LIMIT = 48 * 1024 * 1024    # safe on v5e/v6e (128 MiB) and v7x (64 MiB)


def _round_up(x, m):
    return ((x + m - 1) // m) * m


def _tile_plan(n_dst, n_src, tm_max=_TM_MAX, tk_max=_TK_MAX):
    """Tile sizes + padded extents shared by prepare_adjacency / _gcn_mean."""
    tm = min(tm_max, _round_up(n_dst, 32))
    # Prefer >= 2 dst blocks so the "parallel" dst axis shards across v7x's
    # two TensorCores (no effect on single-TC v5e/v6e, no effect on tiny dims).
    if n_dst > 64 and _round_up(n_dst, tm) // tm < 2:
        tm = _round_up(-(-n_dst // 2), 32)
    tk = min(tk_max, _round_up(n_src, 128))
    n_dst_p = _round_up(n_dst, tm)
    n_src_p = _round_up(n_src, tk)
    return tm, tk, n_dst_p, n_src_p


def prepare_adjacency(adj):
    """Graph-build-time prep (call ONCE): cast the 0/1 adjacency to int8 and
    zero-pad to the kernel's tile multiples, so the forward pass streams A
    straight from HBM with no per-call pad/cast pass."""
    n_dst, n_src = adj.shape
    _, _, n_dst_p, n_src_p = _tile_plan(n_dst, n_src)
    a = jnp.zeros((n_dst_p, n_src_p), jnp.int8)
    return a.at[:n_dst, :n_src].set(adj.astype(jnp.int8))


def _gcn_mean_kernel(a_ref, h_ref, o_ref, *scratch, tk, h_resident, deg_col):
    """o += A_tile @ H_tile across k (o_ref is the resident f32 accumulator);
    at the last k step divide in place by max(in-degree, 1)."""
    k = pl.program_id(1)
    use_ones_col = deg_col is not None
    deg_ref = None if use_ones_col else scratch[0]

    @pl.when(k == 0)
    def _init():
        o_ref[...] = jnp.zeros_like(o_ref)
        if not use_ones_col:
            deg_ref[...] = jnp.zeros_like(deg_ref)

    # A streamed as int8 (8x fewer HBM bytes than f32); the int8->bf16 cast
    # rides on idle VPU slots in this HBM-bound regime.
    a_i8 = a_ref[...]
    a = a_i8.astype(jnp.bfloat16)

    if h_resident:
        start = pl.multiple_of(k * tk, tk)
        hblk = h_ref[pl.ds(start, tk), :]
    else:
        hblk = h_ref[...]

    o_ref[...] += jnp.dot(a, hblk, preferred_element_type=jnp.float32)

    if not use_ones_col:
        # D is a multiple of 128: no spare lane for a ones column, so the
        # in-degree is a per-tile row sum on the otherwise idle XLU/VPU.
        deg_ref[...] += jnp.sum(a_i8.astype(jnp.float32), axis=1, keepdims=True)

    @pl.when(k == pl.num_programs(1) - 1)
    def _finalize():
        acc = o_ref[...]
        if use_ones_col:
            deg = acc[:, deg_col:deg_col + 1]   # ones column of H -> in-degree
        else:
            deg = deg_ref[:, 0:1]
        # dgl's mean over 0 in-edges yields 0; max(deg, 1) keeps 0/1 == 0.
        # In-degree is exact while < 2^24 (f32 accumulation of exact 0/1 terms).
        inv = pl.reciprocal(jnp.maximum(deg, 1.0), approx=False)
        o_ref[...] = acc * inv


def _gcn_mean(adj, feat, n_dst=None, *, tm_max=_TM_MAX, tk_max=_TK_MAX):
    """rst = (A @ H) / max(rowsum(A), 1), tiled over (dst, src)."""
    n_src, d = feat.shape
    if n_dst is None:
        n_dst = adj.shape[0]
    tm, tk, n_dst_p, n_src_p = _tile_plan(n_dst, n_src, tm_max, tk_max)

    d_pad = _round_up(d, 128)
    use_ones_col = d < d_pad            # spare lane available for the degree
    deg_col = d if use_ones_col else None

    if adj.shape == (n_dst_p, n_src_p) and adj.dtype == jnp.int8:
        a = adj                          # prepared at graph-build time: no copy
    else:
        # Fallback: one extra HBM pass.  Prefer prepare_adjacency() up front.
        a = jnp.zeros((n_dst_p, n_src_p), jnp.int8)
        a = a.at[:adj.shape[0], :adj.shape[1]].set(adj.astype(jnp.int8))

    # Features in bf16, zero-padded; ones column at index d (if there is a
    # spare lane) so the in-degree accumulates on the MXU for free.
    h = jnp.zeros((n_src_p, d_pad), jnp.bfloat16)
    h = h.at[:n_src, :d].set(feat.astype(jnp.bfloat16))
    if use_ones_col:
        h = h.at[:n_src, d].set(1.0)

    h_resident = n_src_p * d_pad * 2 <= _H_RESIDENT_BYTES
    if h_resident:
        # Single full-array block, DMA'd once and kept VMEM-resident; sliced
        # in-kernel per k step (removes the per-dst-tile H re-stream).
        h_spec = pl.BlockSpec((n_src_p, d_pad), lambda i, k: (0, 0))
    else:
        h_spec = pl.BlockSpec((tk, d_pad), lambda i, k: (k, 0))

    scratch_shapes = []
    if not use_ones_col:
        scratch_shapes.append(pltpu.VMEM((tm, 128), jnp.float32))

    grid = (n_dst_p // tm, n_src_p // tk)

    out = pl.pallas_call(
        functools.partial(_gcn_mean_kernel, tk=tk, h_resident=h_resident,
                          deg_col=deg_col),
        out_shape=jax.ShapeDtypeStruct((n_dst_p, d_pad), jnp.float32),
        grid_spec=pltpu.PrefetchScalarGridSpec(
            num_scalar_prefetch=0,
            grid=grid,
            in_specs=[
                pl.BlockSpec((tm, tk), lambda i, k: (i, k)),   # A tile, int8
                h_spec,                                        # H (bf16)
            ],
            out_specs=pl.BlockSpec((tm, d_pad), lambda i, k: (i, 0)),
            scratch_shapes=scratch_shapes,
        ),
        compiler_params=_CompilerParams(
            dimension_semantics=("parallel", "arbitrary"),
            vmem_limit_bytes=_VMEM_LIMIT,
        ),
    )(a, h)
    # TODO(synk): skip this slice when the consumer accepts the padded layout.
    return out[:n_dst, :d]


def heter_lightgcn_layer(adjacency, h, op_edges, canonical_etypes,
                         num_nodes=None, training=True, rng_key=None):
    """JAX/Pallas equivalent of HeterLightGCNLayer.forward.

    adjacency: {(src_type, etype, dst_type): 0/1 array, ideally pre-padded
                int8 from prepare_adjacency()}
    h:         {op_edges[etype]: {src_type: (N_src, D) array}}
    num_nodes: optional {node_type: true node count} (needed when adjacency is
               pre-padded); defaults to adjacency row counts.
    returns    {op_edges[etype]: {dst_type: (N_dst, D) f32 array}}
    """
    if rng_key is None:
        rng_key = jax.random.PRNGKey(0)
    rst_dic = {}
    for idx, (src_type, etype, dst_type) in enumerate(canonical_etypes):
        feat = h[op_edges[etype]][src_type]
        if training and etype in ("click", "clicked"):
            # torch.nn.Dropout(p=0.5): one mask on `normed`, applied before
            # aggregation and therefore identical for every destination tile.
            kmask = jax.random.fold_in(rng_key, idx)
            keep = jax.random.bernoulli(kmask, 0.5, feat.shape)
            feat = jnp.where(keep, feat.astype(jnp.float32) * 2.0, 0.0)
        n_dst = None if num_nodes is None else num_nodes[dst_type]
        rst = _gcn_mean(adjacency[(src_type, etype, dst_type)], feat, n_dst)
        rst_dic.setdefault(op_edges[etype], {})[dst_type] = rst
    return rst_dic


if __name__ == "__main__":
    key = jax.random.PRNGKey(0)
    k_adj_ui, k_adj_iu, k_fu, k_fi, k_extra = jax.random.split(key, 5)

    # Small synthetic heterograph: users <-> items.
    n_user, n_item, d = 24, 16, 32
    canonical_etypes = [("user", "click", "item"), ("item", "clicked", "user")]
    op_edges = {"click": "ui", "clicked": "iu"}
    num_nodes = {"user": n_user, "item": n_item}

    adj_ui = (jax.random.uniform(k_adj_ui, (n_item, n_user)) < 0.3).astype(jnp.float32)
    adj_iu = (jax.random.uniform(k_adj_iu, (n_user, n_item)) < 0.3).astype(jnp.float32)
    # Graph-build-time prep: pad + cast to int8 ONCE (no per-forward pad copy).
    adjacency = {
        ("user", "click", "item"): prepare_adjacency(adj_ui),
        ("item", "clicked", "user"): prepare_adjacency(adj_iu),
    }

    h = {
        "ui": {"user": jax.random.normal(k_fu, (n_user, d), dtype=jnp.float32)},
        "iu": {"item": jax.random.normal(k_fi, (n_item, d), dtype=jnp.float32)},
    }

    # Dense JAX reference (features quantized to bf16 like the kernel).
    def ref_mean(adj, feat):
        a32 = adj.astype(jnp.float32)
        f32 = feat.astype(jnp.bfloat16).astype(jnp.float32)
        deg = jnp.maximum(a32.sum(axis=1, keepdims=True), 1.0)
        return (a32 @ f32) / deg

    # Eval-mode correctness check.
    eval_out = heter_lightgcn_layer(adjacency, h, op_edges, canonical_etypes,
                                    num_nodes=num_nodes, training=False)
    jax.block_until_ready(eval_out)
    assert eval_out["ui"]["item"].shape == (n_item, d)
    assert eval_out["iu"]["user"].shape == (n_user, d)
    assert jnp.allclose(eval_out["ui"]["item"], ref_mean(adj_ui, h["ui"]["user"]),
                        atol=1e-3, rtol=1e-3)
    assert jnp.allclose(eval_out["iu"]["user"], ref_mean(adj_iu, h["iu"]["item"]),
                        atol=1e-3, rtol=1e-3)

    # Training mode (dropout p=0.5 on the 'click'/'clicked' source features).
    train_out = heter_lightgcn_layer(adjacency, h, op_edges, canonical_etypes,
                                     num_nodes=num_nodes, training=True,
                                     rng_key=jax.random.PRNGKey(42))
    jax.block_until_ready(train_out)
    assert train_out["ui"]["item"].shape == (n_item, d)
    assert train_out["iu"]["user"].shape == (n_user, d)

    # Extra coverage: D a multiple of 128 (per-tile row-sum degree path, no
    # ones column), multi-k-tile reduction, multi-dst-block grid, and the
    # ragged un-prepared adjacency fallback.
    k_a2, k_f2 = jax.random.split(k_extra)
    n_dst2, n_src2, d2 = 40, 300, 128
    adj2 = (jax.random.uniform(k_a2, (n_dst2, n_src2)) < 0.1).astype(jnp.float32)
    feat2 = jax.random.normal(k_f2, (n_src2, d2), dtype=jnp.float32)
    out2 = _gcn_mean(adj2, feat2, tm_max=32, tk_max=128)
    jax.block_until_ready(out2)
    assert out2.shape == (n_dst2, d2)
    assert jnp.allclose(out2, ref_mean(adj2, feat2), atol=1e-3, rtol=1e-3)

    print("KERNEL_OK")
</pallas_src>

<mosaic_0001>
module attributes {stable_mosaic.version = 11 : i64} {
  func.func @_gcn_mean_kernel(%arg0: i32, %arg1: i32, %arg2: memref<32x128xi8, #tpu.memory_space<vmem>>, %arg3: memref<128x128xbf16, #tpu.memory_space<vmem>>, %arg4: memref<32x128xf32, #tpu.memory_space<vmem>>) attributes {dimension_semantics = [#tpu.dimension_semantics<parallel>, #tpu.dimension_semantics<arbitrary>], iteration_bounds = array<i64: 1, 1>, scalar_prefetch = 0 : i64, scratch_operands = 0 : i64, tpu.core_type = #tpu.core_type<tc>, window_params = [{transform_indices = @transform_0, window_bounds = array<i64: 32, 128>}, {pipeline_mode = #tpu.pipeline_mode<synchronous>, transform_indices = @transform_1, window_bounds = array<i64: 128, 128>}, {transform_indices = @transform_2, window_bounds = array<i64: 32, 128>}]} {
    %c0_i32 = arith.constant 0 : i32
    %0 = arith.cmpi eq, %arg1, %c0_i32 : i32
    %1 = arith.extui %0 : i1 to i32
    %c0_i32_0 = arith.constant 0 : i32
    %2 = arith.cmpi ne, %1, %c0_i32_0 : i32
    scf.if %2 {
      %cst_9 = arith.constant 0.000000e+00 : f32
      %16 = vector.broadcast %cst_9 : f32 to vector<32x128xf32>
      %c0_10 = arith.constant 0 : index
      %c0_11 = arith.constant 0 : index
      %17 = vector.load %arg4[%c0_10, %c0_11] : memref<32x128xf32, #tpu.memory_space<vmem>>, vector<32x128xf32>
      tpu.vector_store %arg4[%c0_10, %c0_11], %16 {strides = array<i32>} : memref<32x128xf32, #tpu.memory_space<vmem>>, vector<32x128xf32>,
    } else {
    }
    %c0 = arith.constant 0 : index
    %c0_1 = arith.constant 0 : index
    %3 = vector.load %arg2[%c0, %c0_1] : memref<32x128xi8, #tpu.memory_space<vmem>>, vector<32x128xi8>
    %4 = arith.sitofp %3 : vector<32x128xi8> to vector<32x128xbf16>
    %c128_i32 = arith.constant 128 : i32
    %5 = arith.muli %arg1, %c128_i32 : i32
    %6 = tpu.assume_multiple %5, 128 : i32
    %7 = arith.index_cast %6 : i32 to index
    %c0_2 = arith.constant 0 : index
    %8 = vector.load %arg3[%7, %c0_2] : memref<128x128xbf16, #tpu.memory_space<vmem>>, vector<128x128xbf16>
    %c0_3 = arith.constant 0 : index
    %c0_4 = arith.constant 0 : index
    %9 = vector.load %arg4[%c0_3, %c0_4] : memref<32x128xf32, #tpu.memory_space<vmem>>, vector<32x128xf32>
    %cst = arith.constant dense<0.000000e+00> : vector<32x128xf32>
    %10 = tpu.matmul %4, %8, %cst {dimension_numbers = #tpu.dot_dimension_numbers<[1], [0], [0], [1], [0, 0, 1, 1], [], []>} : vector<32x128xbf16>, vector<128x128xbf16>, vector<32x128xf32> -> vector<32x128xf32>
    %11 = arith.addf %9, %10 : vector<32x128xf32>
    %c0_5 = arith.constant 0 : index
    %c0_6 = arith.constant 0 : index
    %12 = vector.load %arg4[%c0_5, %c0_6] : memref<32x128xf32, #tpu.memory_space<vmem>>, vector<32x128xf32>
    tpu.vector_store %arg4[%c0_5, %c0_6], %11 {strides = array<i32>} : memref<32x128xf32, #tpu.memory_space<vmem>>, vector<32x128xf32>,
    %c0_i32_7 = arith.constant 0 : i32
    %13 = arith.cmpi eq, %arg1, %c0_i32_7 : i32
    %14 = arith.extui %13 : i1 to i32
    %c0_i32_8 = arith.constant 0 : i32
    %15 = arith.cmpi ne, %14, %c0_i32_8 : i32
    scf.if %15 {
      %c0_9 = arith.constant 0 : index
      %c0_10 = arith.constant 0 : index
      %16 = vector.load %arg4[%c0_9, %c0_10] : memref<32x128xf32, #tpu.memory_space<vmem>>, vector<32x128xf32>
      %17 = vector.extract_strided_slice %16 {offsets = [0, 32], sizes = [32, 1], strides = [1, 1]} : vector<32x128xf32> to vector<32x1xf32>
      %cst_11 = arith.constant 1.000000e+00 : f32
      %18 = vector.broadcast %cst_11 : f32 to vector<32x1xf32>
      %19 = arith.maximumf %17, %18 : vector<32x1xf32>
      %20 = tpu.reciprocal %19 : vector<32x1xf32> -> vector<32x1xf32>
      %21 = vector.broadcast %20 : vector<32x1xf32> to vector<32x128xf32>
      %22 = arith.mulf %16, %21 : vector<32x128xf32>
      %c0_12 = arith.constant 0 : index
      %c0_13 = arith.constant 0 : index
      %23 = vector.load %arg4[%c0_12, %c0_13] : memref<32x128xf32, #tpu.memory_space<vmem>>, vector<32x128xf32>
      tpu.vector_store %arg4[%c0_12, %c0_13], %22 {strides = array<i32>} : memref<32x128xf32, #tpu.memory_space<vmem>>, vector<32x128xf32>,
    } else {
    }
    return
  }
  func.func @transform_0(%arg0: i32, %arg1: i32) -> (i32, i32) {
    %c0_i32 = arith.constant 0 : i32
    return %arg0, %arg1 : i32, i32
  }
  func.func @transform_1(%arg0: i32, %arg1: i32) -> (i32, i32) {
    %c0_i32 = arith.constant 0 : i32
    %c0_i32_0 = arith.constant 0 : i32
    %c0_i32_1 = arith.constant 0 : i32
    return %c0_i32, %c0_i32_0 : i32, i32
  }
  func.func @transform_2(%arg0: i32, %arg1: i32) -> (i32, i32) {
    %c0_i32 = arith.constant 0 : i32
    %c0_i32_0 = arith.constant 0 : i32
    return %arg0, %c0_i32 : i32, i32
  }
}

</mosaic_0001>

<llo_original>
// kernel: tpu_custom_call.1
$region0: #{tpu_custom_call.1}
  #allocation0 [shape = 'u32[]', space=smem, size = 0x4, offset = 0x4, fixed_abs, tag = 'smem constant byte address 0x4 - core index']
  #allocation1 [shape = 'u32[144,128]{1,0:T(1,128)}', space=vmem, size = 0x12000, scoped, tag = 'internal scratch']
  %s0 = inlined_call_operand.hbm [shape: s8[32,128], index: 0, kind: input, shape index: {}]
  %s1 = inlined_call_operand.hbm [shape: bf16[128,128], index: 1, kind: input, shape index: {}]
  %s2 = inlined_call_operand.hbm [shape: f32[32,128], index: 2, kind: output, shape index: {}]
  %s3 = sld [smem:[#allocation0]]
  $region34: #{tpu_custom_call.1} parent=0
    _
  %s5 = ssub.s32 1, %s3
  %s6 = scalar_select 0, %s5, %s3
  $region1: #{tpu_custom_call.1} parent=0
    #allocation2 [shape = 'u8[4096]{0}', space=vmem, size = 0x1000, scoped, tag = 'input window, operand 0, single buffered']
    #allocation3 [shape = 's32[1]{0}', space=sflag, size = 0x4, scoped, tag = 'scoped memory for tpu_custom_call.1']
    #allocation4 [shape = 's32[1]{0}', space=sflag, size = 0x4, scoped, tag = 'scoped memory for tpu_custom_call.1']
    #allocation5 [shape = 'u8[32768]{0}', space=vmem, size = 0x8000, scoped, tag = 'input window, operand 1, single buffered']
    #allocation6 [shape = 's32[1]{0}', space=sflag, size = 0x4, scoped, tag = 'scoped memory for tpu_custom_call.1']
    #allocation7 [shape = 'u8[16384]{0}', space=vmem, size = 0x4000, scoped, tag = 'output window, operand 0, single buffered']
    %7 = vsyncpa [#allocation3], 0
    %8 = vsyncpa [#allocation6], 0
    %9 = vsyncpa [#allocation4], 0
    // Predicated region
    $region2: #{tpu_custom_call.1} parent=1 // pred_check
      _
    $region3: #{tpu_custom_call.1} parent=1 // pred_check_branch
      %11 = sbr.rel (0) target = $region5
    $region4: #{tpu_custom_call.1} parent=1 // pred_region
      %s13 = ssub.s32 128, 128
      %14 = vsyncadd [#allocation3], %s13
      %s16 = sshll.u32 [#allocation2], 4
      %s17 = int_to_ptr.vmem [resolvable:$true] %s16
      %19 = dma.hbm_to_vmem [thread:$0]  %s0, 128, %s17, [#allocation3]
    $region5: #{tpu_custom_call.1} parent=1 // pred_fallthru
      _
    // Predicated region
    $region6: #{tpu_custom_call.1} parent=1 // pred_check
      _
    $region7: #{tpu_custom_call.1} parent=1 // pred_check_branch
      %21 = sbr.rel (0) target = $region9
    $region8: #{tpu_custom_call.1} parent=1 // pred_region
      %s23 = ssub.s32 1024, 1024
      %24 = vsyncadd [#allocation6], %s23
      %s25 = sshll.u32 [#allocation5], 4
      %s26 = int_to_ptr.vmem [resolvable:$true] %s25
      %31 = dma.hbm_to_vmem [thread:$0]  %s1, 1024, %s26, [#allocation6], 64, 64, 4
    $region9: #{tpu_custom_call.1} parent=1 // pred_fallthru
      _
    // Predicated region
    $region10: #{tpu_custom_call.1} parent=1 // pred_check
      _
    $region11: #{tpu_custom_call.1} parent=1 // pred_check_branch
      %33 = sbr.rel (0) target = $region13
    $region12: #{tpu_custom_call.1} parent=1 // pred_region
      %34 = dma.done [#allocation3], 128
    $region13: #{tpu_custom_call.1} parent=1 // pred_fallthru
      _
    // Predicated region
    $region14: #{tpu_custom_call.1} parent=1 // pred_check
      _
    $region15: #{tpu_custom_call.1} parent=1 // pred_check_branch
      %36 = sbr.rel (0) target = $region17
    $region16: #{tpu_custom_call.1} parent=1 // pred_region
      %37 = dma.done [#allocation6], 1024
    $region17: #{tpu_custom_call.1} parent=1 // pred_fallthru
      _
    %p39 = scmp.eq.s32.totalorder 0, 0
    // Predicated region
    $region18: #{tpu_custom_call.1} parent=1 // pred_check
      %p40 = pneg %p39
    $region19: #{tpu_custom_call.1} parent=1 // pred_check_branch
      %42 = sbr.rel (%p40) target = $region21
    $region20: #{tpu_custom_call.1} parent=1 // pred_region
      %43 = vst [vmem:[#allocation7] sm:$0xff] 0.0
      %44 = vst [vmem:[#allocation7 + $0x8] sm:$0xff] 0.0
      %45 = vst [vmem:[#allocation7 + $0x10] sm:$0xff] 0.0
      %46 = vst [vmem:[#allocation7 + $0x18] sm:$0xff] 0.0
    $region21: #{tpu_custom_call.1} parent=1 // pred_fallthru
      _
    %v47 = vld [vmem:[#allocation2] sm:$0xff]
    %v48 = vunpack.c.l.s8.bf16 %v47
    %v49 = vunpack.c.h.s8.bf16 %v47
    %s50 = smul.u32 0, 128
    %s51 = sshra.s32 %s50, 3
    %s52 = sand.u32 %s50, 7
    %s53 = smul.addr %s51, 4
    %s54 = scalar_lea.vmem [#allocation5], %s53
    %v55 = vld [vmem:[%s54] sm:$0xf]
    %v56 = vld [vmem:[%s54 + $0x4] sm:$0xf]
    %v57 = vld [vmem:[%s54 + $0x8] sm:$0xf]
    %v58 = vld [vmem:[%s54 + $0xc] sm:$0xf]
    %v59 = vld [vmem:[%s54 + $0x10] sm:$0xf]
    %v60 = vld [vmem:[%s54 + $0x14] sm:$0xf]
    %v61 = vld [vmem:[%s54 + $0x18] sm:$0xf]
    %v62 = vld [vmem:[%s54 + $0x1c] sm:$0xf]
    %v63 = vld [vmem:[%s54 + $0x20] sm:$0xf]
    %v64 = vld [vmem:[%s54 + $0x24] sm:$0xf]
    %v65 = vld [vmem:[%s54 + $0x28] sm:$0xf]
    %v66 = vld [vmem:[%s54 + $0x2c] sm:$0xf]
    %v67 = vld [vmem:[%s54 + $0x30] sm:$0xf]
    %v68 = vld [vmem:[%s54 + $0x34] sm:$0xf]
    %v69 = vld [vmem:[%s54 + $0x38] sm:$0xf]
    %v70 = vld [vmem:[%s54 + $0x3c] sm:$0xf]
    %v71 = vld [vmem:[#allocation7] sm:$0xff]
    %v72 = vld [vmem:[#allocation7 + $0x8] sm:$0xff]
    %v73 = vld [vmem:[#allocation7 + $0x10] sm:$0xff]
    %v74 = vld [vmem:[#allocation7 + $0x18] sm:$0xff]
    %v91 = vunpack.c.l.b16 %v55
    %v92 = vunpack.c.l.b16 %v56
    %v93 = vunpack.c.l.b16 %v57
    %v94 = vunpack.c.l.b16 %v58
    %v95 = vunpack.c.l.b16 %v59
    %v96 = vunpack.c.l.b16 %v60
    %v97 = vunpack.c.l.b16 %v61
    %v98 = vunpack.c.l.b16 %v62
    %v99 = vunpack.c.l.b16 %v63
    %v100 = vunpack.c.l.b16 %v64
    %v101 = vunpack.c.l.b16 %v65
    %v102 = vunpack.c.l.b16 %v66
    %v103 = vunpack.c.l.b16 %v67
    %v104 = vunpack.c.l.b16 %v68
    %v105 = vunpack.c.l.b16 %v69
    %v106 = vunpack.c.l.b16 %v70
    %v107 = vpack.c.b16 %v92, %v91
    %v108 = vpack.c.b16 %v94, %v93
    %v109 = vpack.c.b16 %v96, %v95
    %v110 = vpack.c.b16 %v98, %v97
    %v111 = vpack.c.b16 %v100, %v99
    %v112 = vpack.c.b16 %v102, %v101
    %v113 = vpack.c.b16 %v104, %v103
    %v114 = vpack.c.b16 %v106, %v105
    %123 = vmatprep.subr.bf16.mxu0 0
    %124 = vmatpush1.bf16.msra.mxu0 %v107
    %125 = vmatprep.subr.bf16.mxu0 0
    %126 = vmatpush1.bf16.msra.mxu0 %v108
    %127 = vmatprep.subr.bf16.mxu0 0
    %128 = vmatpush1.bf16.msra.mxu0 %v109
    %129 = vmatprep.subr.bf16.mxu0 0
    %130 = vmatpush1.bf16.msra.mxu0 %v110
    %131 = vmatprep.subr.bf16.mxu0 0
    %132 = vmatpush1.bf16.msra.mxu0 %v111
    %133 = vmatprep.subr.bf16.mxu0 0
    %134 = vmatpush1.bf16.msra.mxu0 %v112
    %135 = vmatprep.subr.bf16.mxu0 0
    %136 = vmatpush1.bf16.msra.mxu0 %v113
    %137 = vmatprep.subr.bf16.mxu0 0
    %138 = vmatpush1.bf16.msra.mxu0 %v114
    %139 = vmatprep.subr.bf16.mxu0 0
    %140 = vmatpush1.bf16.msra.mxu0 0
    %141 = vmatprep.subr.bf16.mxu0 0
    %142 = vmatpush1.bf16.msra.mxu0 0
    %143 = vmatprep.subr.bf16.mxu0 0
    %144 = vmatpush1.bf16.msra.mxu0 0
    %145 = vmatprep.subr.bf16.mxu0 0
    %146 = vmatpush1.bf16.msra.mxu0 0
    %147 = vmatprep.subr.bf16.mxu0 0
    %148 = vmatpush1.bf16.msra.mxu0 0
    %149 = vmatprep.subr.bf16.mxu0 0
    %150 = vmatpush1.bf16.msra.mxu0 0
    %151 = vmatprep.subr.bf16.mxu0 0
    %152 = vmatpush1.bf16.msra.mxu0 0
    %153 = vmatprep.subr.bf16.mxu0 0
    %154 = vmatpush1.bf16.msra.mxu0 0
    %155 = vmatprep.mubr.bf16.mxu0 0
    %156 = vmatmul.mubr.bf16.gmra.mrb[0].mxu0 %v48
    %v157 = vpop.f32.mrb[0].mxu0
    %v158 = vadd.f32 0.0, %v157
    %v159 = vpop.f32.mrb[0].mxu0
    %v160 = vpop.f32.mrb[0].mxu0
    %v161 = vadd.f32 0.0, %v160
    %v162 = vpop.f32.mrb[0].mxu0
    %163 = vmatprep.mubr.bf16.mxu0 0
    %164 = vmatmul.mubr.bf16.gmra.mrb[0].mxu0 %v49
    %v165 = vpop.f32.mrb[0].mxu0
    %v166 = vadd.f32 0.0, %v165
    %v167 = vpop.f32.mrb[0].mxu0
    %v168 = vpop.f32.mrb[0].mxu0
    %v169 = vadd.f32 0.0, %v168
    %v170 = vpop.f32.mrb[0].mxu0
    %171 = vdwg.mxu0
    %v172 = vadd.f32 %v71, %v158
    %v173 = vadd.f32 %v72, %v161
    %v174 = vadd.f32 %v73, %v166
    %v175 = vadd.f32 %v74, %v169
    %176 = vst [vmem:[#allocation7] sm:$0xff] %v172
    %177 = vst [vmem:[#allocation7 + $0x8] sm:$0xff] %v173
    %178 = vst [vmem:[#allocation7 + $0x10] sm:$0xff] %v174
    %179 = vst [vmem:[#allocation7 + $0x18] sm:$0xff] %v175
    // Predicated region
    $region22: #{tpu_custom_call.1} parent=1 // pred_check
      %p180 = pneg %p39
    $region23: #{tpu_custom_call.1} parent=1 // pred_check_branch
      %182 = sbr.rel (%p180) target = $region25
    $region24: #{tpu_custom_call.1} parent=1 // pred_region
      %v183 = vld [vmem:[#allocation7] sm:$0xff]
      %v184 = vld [vmem:[#allocation7 + $0x8] sm:$0xff]
      %v185 = vld [vmem:[#allocation7 + $0x10] sm:$0xff]
      %v186 = vld [vmem:[#allocation7 + $0x18] sm:$0xff]
      %v187 = vmax.f32 %v183, 1.0
      %v188 = vmax.f32 %v184, 1.0
      %v189 = vmax.f32 %v185, 1.0
      %v190 = vmax.f32 %v186, 1.0
      %v191 = vrcp.pop %v187
      %v192 = vrcp.pop %v188
      %v193 = vrcp.pop %v189
      %v194 = vrcp.pop %v190
      %196 = vset.pattern.permute.xlu0 32
      %197 = vperm.xlu0 %196, %v191
      %v198 = vpop.permute.xlu0 %197
      %201 = vset.pattern.permute.xlu0 32
      %202 = vperm.xlu0 %201, %v192
      %v203 = vpop.permute.xlu0 %202
      %206 = vset.pattern.permute.xlu0 32
      %207 = vperm.xlu0 %206, %v193
      %v208 = vpop.permute.xlu0 %207
      %211 = vset.pattern.permute.xlu0 32
      %212 = vperm.xlu0 %211, %v194
      %v213 = vpop.permute.xlu0 %212
      %v215 = vmul.f32 %v183, %v198
      %v216 = vmul.f32 %v184, %v203
      %v217 = vmul.f32 %v185, %v208
      %v218 = vmul.f32 %v186, %v213
      %219 = vst [vmem:[#allocation7] sm:$0xff] %v215
      %220 = vst [vmem:[#allocation7 + $0x8] sm:$0xff] %v216
      %221 = vst [vmem:[#allocation7 + $0x10] sm:$0xff] %v217
      %222 = vst [vmem:[#allocation7 + $0x18] sm:$0xff] %v218
    $region25: #{tpu_custom_call.1} parent=1 // pred_fallthru
      _
    // Predicated region
    $region26: #{tpu_custom_call.1} parent=1 // pred_check
      _
    $region27: #{tpu_custom_call.1} parent=1 // pred_check_branch
      %224 = sbr.rel (0) target = $region29
    $region28: #{tpu_custom_call.1} parent=1 // pred_region
      %s226 = ssub.s32 512, 512
      %227 = vsyncadd [#allocation4], %s226
      %s228 = sshll.u32 [#allocation7], 4
      %s229 = int_to_ptr.vmem [resolvable:$true] %s228
      %234 = dma.vmem_to_hbm [thread:$0]  %s229, 512, %s2, [#allocation4], 128, 128, 8
    $region29: #{tpu_custom_call.1} parent=1 // pred_fallthru
      _
    // Predicated region
    $region30: #{tpu_custom_call.1} parent=1 // pred_check
      _
    $region31: #{tpu_custom_call.1} parent=1 // pred_check_branch
      %236 = sbr.rel (0) target = $region33
    $region32: #{tpu_custom_call.1} parent=1 // pred_region
      %237 = dma.done [#allocation4], 512
    $region33: #{tpu_custom_call.1} parent=1 // pred_fallthru
      _
    %238 = vsyncpa [#allocation3], 1
    %239 = vsyncpa [#allocation6], 1
    %240 = vsyncpa [#allocation4], 1

</llo_original>
